<compile_context>
chip_gen: v6e
topology: v6e:2x2x1
jax: 0.10.0
libtpu: 0.0.40
codegen_flags: <defaults>
</compile_context>

<pallas_src>
import functools

import jax
import jax.numpy as jnp
from jax.experimental import pallas as pl
from jax.experimental.pallas import tpu as pltpu


# -----------------------------------------------------------------------------
# Config (the parts of cfg the module actually uses)
# -----------------------------------------------------------------------------
class Cfg:
    NUM_CLASSES = 6
    BOXES_PER_LOCATION = (4, 6)      # per feature level
    OUT_CHANNELS = (4, 8)            # backbone channels per feature level
    FEATURE_SIZES = (16, 8)          # spatial size of each feature level


def _round_up(x, m):
    return (x + m - 1) // m * m


def _layout(num_classes, boxes_per_location, out_channels, feature_sizes):
    """Static block-diagonal packing layout shared by init and forward.

    K axis : [lvl0 taps | lvl1 taps | ... | bias ones-column | zero pad] -> 128
    N axis : [lvl0 cls | lvl0 reg | lvl1 cls | lvl1 reg | ... | zero pad] -> 128
    M axis : [lvl0 pixels (H*W) | lvl1 pixels | ... | zero pad]
    """
    k_off, n_off, m_off = [], [], []
    k = n = m = 0
    for bpl, cin, fs in zip(boxes_per_location, out_channels, feature_sizes):
        k_off.append(k)
        n_off.append(n)
        m_off.append(m)
        k += 9 * cin
        n += bpl * num_classes + bpl * 4
        m += fs * fs
    bias_row = k
    k_pad = _round_up(k + 1, 128)    # +1 = folded-bias ones column
    n_pad = _round_up(n, 128)        # lane-dense output -> unmasked stores
    m_pad = _round_up(m, 8)
    return (tuple(k_off), tuple(n_off), tuple(m_off),
            bias_row, k_pad, n_pad, m, m_pad)


# -----------------------------------------------------------------------------
# Fused Pallas kernel: one MXU pass per batch element.
# -----------------------------------------------------------------------------
def _fused_head_kernel(p_ref, w_ref, o_ref):
    # p_ref: (1, M, Kp) bf16   w_ref: (Kp, Np) bf16   o_ref: (1, M, Np) f32
    # Single matmul covers both levels, both branches and the biases
    # (block-diagonal weight + ones column); f32 accumulation on the MXU.
    o_ref[0] = jnp.dot(p_ref[0], w_ref[...],
                       preferred_element_type=jnp.float32)


def _im2col_3x3(x_nhwc):
    """(B, H, W, C) -> (B, H*W, 9*C) patch matrix of a 3x3 stride-1 'same' conv.

    Column order is (kh, kw, cin), matching w_hwio.reshape(9*C, Cout)."""
    B, H, W, C = x_nhwc.shape
    xp = jnp.pad(x_nhwc, ((0, 0), (1, 1), (1, 1), (0, 0)))
    taps = [xp[:, kh:kh + H, kw:kw + W, :]
            for kh in range(3) for kw in range(3)]           # 9 x (B, H, W, C)
    return jnp.concatenate(taps, axis=-1).reshape(B, H * W, 9 * C)


@functools.partial(jax.jit, static_argnames=("num_classes", "boxes_per_location",
                                              "out_channels", "feature_sizes"))
def box_predictor_forward(packed_w, features_nchw, *, num_classes,
                          boxes_per_location, out_channels, feature_sizes):
    """Fused BoxPredictor forward.  packed_w: (Kp, Np) bf16 block-diag weight."""
    (k_off, n_off, m_off, bias_row,
     k_pad, n_pad, m_used, m_pad) = _layout(num_classes, boxes_per_location,
                                            out_channels, feature_sizes)
    B = features_nchw[0].shape[0]

    # Prologue (fused by XLA): NCHW->NHWC, im2col, bf16 cast, block-diagonal
    # K packing, M stacking, folded-bias ones column.
    # TODO(synk): the im2col could be built in-kernel from a padded NHWC block
    # to avoid the 9x-inflated HBM round trip; kept as a fused XLA prologue.
    rows = []
    for lvl, feat in enumerate(features_nchw):
        cin = out_channels[lvl]
        p = _im2col_3x3(jnp.transpose(feat, (0, 2, 3, 1))).astype(jnp.bfloat16)
        p = jnp.pad(p, ((0, 0), (0, 0),
                        (k_off[lvl], k_pad - k_off[lvl] - 9 * cin)))
        rows.append(p)                                        # (B, HW_l, Kp)
    slab = jnp.concatenate(rows, axis=1)                      # (B, M, Kp)
    slab = slab.at[:, :, bias_row].set(1.0)                   # folded bias
    if m_pad != m_used:
        slab = jnp.pad(slab, ((0, 0), (0, m_pad - m_used), (0, 0)))

    out = pl.pallas_call(
        _fused_head_kernel,
        out_shape=jax.ShapeDtypeStruct((B, m_pad, n_pad), jnp.float32),
        grid=(B,),
        in_specs=[pl.BlockSpec((1, m_pad, k_pad), lambda b: (b, 0, 0)),
                  pl.BlockSpec((k_pad, n_pad), lambda b: (0, 0))],
        out_specs=pl.BlockSpec((1, m_pad, n_pad), lambda b: (b, 0, 0)),
        compiler_params=pltpu.CompilerParams(
            dimension_semantics=("parallel",)),
    )(slab, packed_w)

    # Epilogue: slice the per-level / per-branch outputs out of the fused slab
    # and apply the PyTorch permute->view->cat->view glue.
    cls_flat, reg_flat = [], []
    for lvl, (bpl, fs) in enumerate(zip(boxes_per_location, feature_sizes)):
        hw = fs * fs
        ccls = bpl * num_classes
        creg = bpl * 4
        o = out[:, m_off[lvl]:m_off[lvl] + hw, :]
        cls_flat.append(o[:, :, n_off[lvl]:n_off[lvl] + ccls].reshape(B, -1))
        reg_flat.append(
            o[:, :, n_off[lvl] + ccls:n_off[lvl] + ccls + creg].reshape(B, -1))
    cls_logits = jnp.concatenate(cls_flat, axis=1).reshape(B, -1, num_classes)
    bbox_pred = jnp.concatenate(reg_flat, axis=1).reshape(B, -1, 4)
    return cls_logits, bbox_pred


# -----------------------------------------------------------------------------
# Parameter init (matches nn.init.xavier_uniform_ / zeros_ of the reference)
# -----------------------------------------------------------------------------
def _xavier_uniform_conv(key, cin, cout, kh=3, kw=3):
    fan_in = cin * kh * kw
    fan_out = cout * kh * kw
    bound = (6.0 / (fan_in + fan_out)) ** 0.5
    return jax.random.uniform(key, (kh, kw, cin, cout), jnp.float32,
                              minval=-bound, maxval=bound)


class BoxPredictorPallas:
    def __init__(self, cfg, key):
        self.cfg = cfg
        nc = cfg.NUM_CLASSES
        (k_off, n_off, _m_off, bias_row,
         k_pad, n_pad, _m, _m_pad) = _layout(
            nc, cfg.BOXES_PER_LOCATION, cfg.OUT_CHANNELS, cfg.FEATURE_SIZES)

        w = jnp.zeros((k_pad, n_pad), jnp.float32)
        self.hwio_weights = []    # HWIO weights kept for the XLA reference
        for lvl, (bpl, cin) in enumerate(zip(cfg.BOXES_PER_LOCATION,
                                             cfg.OUT_CHANNELS)):
            key, k1, k2 = jax.random.split(key, 3)
            ccls = bpl * nc
            creg = bpl * 4
            wc = _xavier_uniform_conv(k1, cin, ccls)
            wr = _xavier_uniform_conv(k2, cin, creg)
            bc = jnp.zeros((ccls,), jnp.float32)
            br = jnp.zeros((creg,), jnp.float32)
            self.hwio_weights.append((wc, wr))
            ko, no = k_off[lvl], n_off[lvl]
            w = w.at[ko:ko + 9 * cin, no:no + ccls].set(
                wc.reshape(9 * cin, ccls))
            w = w.at[ko:ko + 9 * cin, no + ccls:no + ccls + creg].set(
                wr.reshape(9 * cin, creg))
            w = w.at[bias_row, no:no + ccls].set(bc)
            w = w.at[bias_row, no + ccls:no + ccls + creg].set(br)
        # bf16 matmul operand (default MXU precision truncates to bf16 anyway).
        self.packed_w = w.astype(jnp.bfloat16)

    def __call__(self, features_nchw):
        return box_predictor_forward(
            self.packed_w, tuple(features_nchw),
            num_classes=self.cfg.NUM_CLASSES,
            boxes_per_location=tuple(self.cfg.BOXES_PER_LOCATION),
            out_channels=tuple(self.cfg.OUT_CHANNELS),
            feature_sizes=tuple(self.cfg.FEATURE_SIZES))


class SSDBoxHeadPallas:
    def __init__(self, cfg, key):
        self.cfg = cfg
        self.predictor = BoxPredictorPallas(cfg, key)
        # TODO(synk): MultiBoxLoss (hard-negative mining), PriorBox and
        # PostProcessor (NMS) are not part of the provided sources; forward
        # returns the raw (cls_logits, bbox_pred) like the training path.

    def __call__(self, features_nchw, targets=None):
        cls_logits, bbox_pred = self.predictor(features_nchw)
        detections = (cls_logits, bbox_pred)
        return detections, {}


# -----------------------------------------------------------------------------
# XLA reference (same glue semantics as the PyTorch module) for a sanity check
# -----------------------------------------------------------------------------
def _reference_forward(hwio_weights, features_nchw, num_classes):
    cls_flat, reg_flat = [], []
    for feat, (wc, wr) in zip(features_nchw, hwio_weights):
        x = jnp.transpose(feat, (0, 2, 3, 1))
        cls = jax.lax.conv_general_dilated(
            x, wc, (1, 1), "SAME", dimension_numbers=("NHWC", "HWIO", "NHWC"),
            precision=jax.lax.Precision.HIGHEST)
        reg = jax.lax.conv_general_dilated(
            x, wr, (1, 1), "SAME", dimension_numbers=("NHWC", "HWIO", "NHWC"),
            precision=jax.lax.Precision.HIGHEST)
        cls_flat.append(cls.reshape(cls.shape[0], -1))
        reg_flat.append(reg.reshape(reg.shape[0], -1))
    B = features_nchw[0].shape[0]
    cls_logits = jnp.concatenate(cls_flat, axis=1).reshape(B, -1, num_classes)
    bbox_pred = jnp.concatenate(reg_flat, axis=1).reshape(B, -1, 4)
    return cls_logits, bbox_pred


if __name__ == "__main__":
    cfg = Cfg()
    key = jax.random.PRNGKey(0)
    key, kf0, kf1, kp = jax.random.split(key, 4)

    # Small deterministic feature pyramid (NCHW, like the PyTorch module).
    features = [
        jax.random.normal(kf0, (2, cfg.OUT_CHANNELS[0],
                                cfg.FEATURE_SIZES[0], cfg.FEATURE_SIZES[0]),
                          jnp.float32),
        jax.random.normal(kf1, (2, cfg.OUT_CHANNELS[1],
                                cfg.FEATURE_SIZES[1], cfg.FEATURE_SIZES[1]),
                          jnp.float32),
    ]

    head = SSDBoxHeadPallas(cfg, kp)
    (cls_logits, bbox_pred), loss_dict = head(features)
    cls_logits = jax.block_until_ready(cls_logits)
    bbox_pred = jax.block_until_ready(bbox_pred)

    # Shape checks (match the PyTorch forward semantics).
    n_priors = sum(s * s * b for s, b in
                   zip(cfg.FEATURE_SIZES, cfg.BOXES_PER_LOCATION))
    assert cls_logits.shape == (2, n_priors, cfg.NUM_CLASSES), cls_logits.shape
    assert bbox_pred.shape == (2, n_priors, 4), bbox_pred.shape

    # Numerical check against an f32 HIGHEST-precision XLA-conv reference.
    # The kernel computes with bf16 operands + f32 accumulation (equivalent to
    # default MXU precision on f32 inputs), hence the ~3e-2 tolerance.
    ref_cls, ref_reg = _reference_forward(head.predictor.hwio_weights,
                                          features, cfg.NUM_CLASSES)
    err_c = float(jnp.max(jnp.abs(cls_logits - ref_cls)))
    err_r = float(jnp.max(jnp.abs(bbox_pred - ref_reg)))
    assert err_c < 3e-2 and err_r < 3e-2, (err_c, err_r)

    print("KERNEL_OK")
</pallas_src>

<mosaic_0001>
module attributes {stable_mosaic.version = 11 : i64} {
  func.func @_fused_head_kernel(%arg0: i32, %arg1: memref<1x320x128xbf16, #tpu.memory_space<vmem>>, %arg2: memref<128x128xbf16, #tpu.memory_space<vmem>>, %arg3: memref<1x320x128xf32, #tpu.memory_space<vmem>>) attributes {dimension_semantics = [#tpu.dimension_semantics<parallel>], iteration_bounds = array<i64: 2>, scalar_prefetch = 0 : i64, scratch_operands = 0 : i64, tpu.core_type = #tpu.core_type<tc>, window_params = [{transform_indices = @transform_0, window_bounds = array<i64: 1, 320, 128>}, {pipeline_mode = #tpu.pipeline_mode<synchronous>, transform_indices = @transform_1, window_bounds = array<i64: 128, 128>}, {transform_indices = @transform_2, window_bounds = array<i64: 1, 320, 128>}]} {
    %c0 = arith.constant 0 : index
    %c0_0 = arith.constant 0 : index
    %c0_1 = arith.constant 0 : index
    %0 = vector.load %arg1[%c0, %c0_0, %c0_1] : memref<1x320x128xbf16, #tpu.memory_space<vmem>>, vector<1x320x128xbf16>
    %1 = vector.shape_cast %0 : vector<1x320x128xbf16> to vector<320x128xbf16>
    %c0_2 = arith.constant 0 : index
    %c0_3 = arith.constant 0 : index
    %2 = vector.load %arg2[%c0_2, %c0_3] : memref<128x128xbf16, #tpu.memory_space<vmem>>, vector<128x128xbf16>
    %cst = arith.constant dense<0.000000e+00> : vector<320x128xf32>
    %3 = tpu.matmul %1, %2, %cst {dimension_numbers = #tpu.dot_dimension_numbers<[1], [0], [0], [1], [0, 0, 1, 1], [], []>} : vector<320x128xbf16>, vector<128x128xbf16>, vector<320x128xf32> -> vector<320x128xf32>
    %c0_4 = arith.constant 0 : index
    %c0_5 = arith.constant 0 : index
    %c0_6 = arith.constant 0 : index
    %4 = vector.load %arg3[%c0_4, %c0_5, %c0_6] : memref<1x320x128xf32, #tpu.memory_space<vmem>>, vector<1x320x128xf32>
    %5 = vector.shape_cast %4 : vector<1x320x128xf32> to vector<320x128xf32>
    %6 = vector.shape_cast %3 : vector<320x128xf32> to vector<1x320x128xf32>
    tpu.vector_store %arg3[%c0_4, %c0_5, %c0_6], %6 {strides = array<i32>} : memref<1x320x128xf32, #tpu.memory_space<vmem>>, vector<1x320x128xf32>,
    return
  }
  func.func @transform_0(%arg0: i32) -> (i32, i32, i32) {
    %c0_i32 = arith.constant 0 : i32
    %c0_i32_0 = arith.constant 0 : i32
    %c0_i32_1 = arith.constant 0 : i32
    return %arg0, %c0_i32, %c0_i32_0 : i32, i32, i32
  }
  func.func @transform_1(%arg0: i32) -> (i32, i32) {
    %c0_i32 = arith.constant 0 : i32
    %c0_i32_0 = arith.constant 0 : i32
    %c0_i32_1 = arith.constant 0 : i32
    return %c0_i32, %c0_i32_0 : i32, i32
  }
  func.func @transform_2(%arg0: i32) -> (i32, i32, i32) {
    %c0_i32 = arith.constant 0 : i32
    %c0_i32_0 = arith.constant 0 : i32
    %c0_i32_1 = arith.constant 0 : i32
    return %arg0, %c0_i32, %c0_i32_0 : i32, i32, i32
  }
}

</mosaic_0001>

<llo_original>
// kernel: box_predictor_forward.1
$region0: #{box_predictor_forward.1}
  #allocation0 [shape = 'u32[]', space=smem, size = 0x4, offset = 0x4, fixed_abs, tag = 'smem constant byte address 0x4 - core index']
  #allocation1 [shape = 'u32[144,128]{1,0:T(1,128)}', space=vmem, size = 0x12000, scoped, tag = 'internal scratch']
  %s0 = inlined_call_operand.vmem [shape: bf16[2,320,128], index: 0, kind: input, shape index: {}]
  %s1 = inlined_call_operand.vmem [shape: bf16[128,128], index: 1, kind: input, shape index: {}]
  %s2 = inlined_call_operand.vmem [shape: f32[2,320,128], index: 2, kind: output, shape index: {}]
  %s3 = sld [smem:[#allocation0]]
  $region41: #{box_predictor_forward.1} parent=0
    _
  %s5 = ssub.s32 1, %s3
  %s6 = scalar_select 0, %s5, %s3
  loop: start=0, step=1, limit=4
  $region2: #{box_predictor_forward.1} parent=0 // loop_pre_header
    _
  $region3: #{box_predictor_forward.1} parent=0 // loop_header
    %s8 = sphi 0, %s12
    %p9 = scmp.ge.s32.totalorder %s8, 4
    %s18 = sphi 0, %s20
    %s21 = sphi 0, %s18
    %s22 = sphi 0, %s21
    %s38 = sphi 0, %s22
    %s42 = sphi 0, %s42
    %s44 = sphi 0, %s42
    %s45 = sphi 0, %s44
    %s59 = sphi 0, %s45
    %s65 = sphi 0, %s67
    %s68 = sphi 0, %s65
    %s69 = sphi 0, %s68
    %s85 = sphi 0, %s69
  $region4: #{box_predictor_forward.1} parent=0 // loop_header_branch
    %11 = sbr.rel (%p9) target = $region8
  $region5: #{box_predictor_forward.1} parent=0 // loop_body
    %s13 = ssub.s32 %s8, 1
    %s14 = ssub.s32 %s8, 2
    %s15 = sadd.s32 %s8, 1
    %s16 = ssub.s32 %s8, %s15
    %p17 = scmp.eq.s32.totalorder %s16, 0
    %s19 = sadd.s32 %s18, 1
    %s20 = scalar_select %p17, %s18, %s19
    %p23 = pneg %p17
    %p24 = scmp.eq.s32.totalorder %s8, 1
    %p25 = por %p23, %p24
    %p26 = scmp.ne.s32.totalorder %s18, %s21
    %p27 = scmp.eq.s32.totalorder %s8, 0
    %p28 = por %p26, %p27
    %p29 = scmp.ne.s32.totalorder %s18, %s21
    %p30 = scmp.eq.s32.totalorder %s13, 1
    %p31 = por %p29, %p30
    %p32 = scmp.ne.s32.totalorder %s21, %s22
    %p33 = scmp.eq.s32.totalorder %s13, 0
    %p34 = por %p32, %p33
    %p35 = scmp.ne.s32.totalorder %s21, %s22
    %p36 = scmp.eq.s32.totalorder %s14, 1
    %p37 = por %p35, %p36
    %p39 = scmp.ne.s32.totalorder %s22, %s38
    %p40 = scmp.eq.s32.totalorder %s14, 0
    %p41 = por %p39, %p40
    %s43 = sadd.s32 %s42, 1
    %p46 = scmp.eq.s32.totalorder %s8, 1
    %p47 = scmp.ne.s32.totalorder %s42, %s44
    %p48 = scmp.eq.s32.totalorder %s8, 0
    %p49 = por %p47, %p48
    %p50 = scmp.ne.s32.totalorder %s42, %s44
    %p51 = scmp.eq.s32.totalorder %s13, 1
    %p52 = por %p50, %p51
    %p53 = scmp.ne.s32.totalorder %s44, %s45
    %p54 = scmp.eq.s32.totalorder %s13, 0
    %p55 = por %p53, %p54
    %p56 = scmp.ne.s32.totalorder %s44, %s45
    %p57 = scmp.eq.s32.totalorder %s14, 1
    %p58 = por %p56, %p57
    %p60 = scmp.ne.s32.totalorder %s45, %s59
    %p61 = scmp.eq.s32.totalorder %s14, 0
    %p62 = por %p60, %p61
    %s63 = ssub.s32 %s8, %s15
    %p64 = scmp.eq.s32.totalorder %s63, 0
    %s66 = sadd.s32 %s65, 1
    %s67 = scalar_select %p64, %s65, %s66
    %p70 = pneg %p64
    %p71 = scmp.eq.s32.totalorder %s8, 1
    %p72 = por %p70, %p71
    %p73 = scmp.ne.s32.totalorder %s65, %s68
    %p74 = scmp.eq.s32.totalorder %s8, 0
    %p75 = por %p73, %p74
    %p76 = scmp.ne.s32.totalorder %s65, %s68
    %p77 = scmp.eq.s32.totalorder %s13, 1
    %p78 = por %p76, %p77
    %p79 = scmp.ne.s32.totalorder %s68, %s69
    %p80 = scmp.eq.s32.totalorder %s13, 0
    %p81 = por %p79, %p80
    %p82 = scmp.ne.s32.totalorder %s68, %s69
    %p83 = scmp.eq.s32.totalorder %s14, 1
    %p84 = por %p82, %p83
    %p86 = scmp.ne.s32.totalorder %s69, %s85
    %p87 = scmp.eq.s32.totalorder %s14, 0
    %p88 = por %p86, %p87
    %p89 = scmp.le.s32.totalorder 1, %s8
    %p90 = scmp.lt.s32.totalorder %s8, 3
    %p91 = pnand %p89, %p90
    %p92 = pneg %p91
    // Predicated region
    $region9: #{box_predictor_forward.1} parent=5 // pred_check
      _
    $region10: #{box_predictor_forward.1} parent=5 // pred_check_branch
      %94 = sbr.rel (%p91) target = $region12
    $region11: #{box_predictor_forward.1} parent=5 // pred_region
      %s95 = ssub.s32 %s8, 1
      // Predicated region
      $region13: #{box_predictor_forward.1} parent=11 // pred_check
        %p96 = pneg %p55
      $region14: #{box_predictor_forward.1} parent=11 // pred_check_branch
        %98 = sbr.rel (%p96) target = $region16
      $region15: #{box_predictor_forward.1} parent=11 // pred_region
        _
      $region16: #{box_predictor_forward.1} parent=11 // pred_fallthru
        _
    $region12: #{box_predictor_forward.1} parent=5 // pred_fallthru
      _
    %p99 = scmp.lt.s32.totalorder %s8, 2
    // Predicated region
    $region17: #{box_predictor_forward.1} parent=5 // pred_check
      %p100 = pneg %p99
    $region18: #{box_predictor_forward.1} parent=5 // pred_check_branch
      %102 = sbr.rel (%p100) target = $region20
    $region19: #{box_predictor_forward.1} parent=5 // pred_region
      // Predicated region
      $region21: #{box_predictor_forward.1} parent=19 // pred_check
        %p103 = pneg %p28
      $region22: #{box_predictor_forward.1} parent=19 // pred_check_branch
        %105 = sbr.rel (%p103) target = $region24
      $region23: #{box_predictor_forward.1} parent=19 // pred_region
        %p106 = scmp.lt.s32.totalorder %s8, 1
        %s107 = scalar_select %p106, %s8, 1
        %s108 = smul.addr %s107, 40
        %s109 = smul.addr %s108, 4
        %s110 = scalar_lea.vmem %s0, %s109
      $region24: #{box_predictor_forward.1} parent=19 // pred_fallthru
        _
    $region20: #{box_predictor_forward.1} parent=5 // pred_fallthru
      _
    %p111 = scmp.le.s32.totalorder 1, %s8
    %p112 = scmp.lt.s32.totalorder %s8, 3
    %p113 = pnand %p111, %p112
    %p114 = pneg %p113
    // Predicated region
    $region25: #{box_predictor_forward.1} parent=5 // pred_check
      _
    $region26: #{box_predictor_forward.1} parent=5 // pred_check_branch
      %116 = sbr.rel (%p113) target = $region28
    $region27: #{box_predictor_forward.1} parent=5 // pred_region
      %s117 = ssub.s32 %s8, 1
      %p118 = scmp.lt.s32.totalorder %s13, 1
      %s119 = scalar_select %p118, %s13, 1
      %s120 = smul.addr %s119, 40
      %s121 = smul.addr %s120, 4
      %s122 = scalar_lea.vmem %s0, %s121
      %p123 = pneg %p34
      %p124 = pneg %p31
      %p125 = pneg %p55
      %p126 = pneg %p52
      %p127 = pneg %p81
      %p128 = pneg %p78
      %p129 = scmp.lt.s32.totalorder %s13, 1
      %s130 = scalar_select %p129, %s13, 1
      %s131 = smul.addr %s130, 40
      %s132 = smul.addr %s131, 8
      %s133 = scalar_lea.vmem %s2, %s132
      %p134 = scmp.lt.s32.totalorder %s13, 1
      %s135 = scalar_select %p134, %s13, 1
      %s136 = smul.addr %s135, 40
      %s137 = smul.addr %s136, 4
      %s138 = scalar_lea.vmem %s0, %s137
      %p139 = scmp.lt.s32.totalorder %s13, 1
      %s140 = scalar_select %p139, %s13, 1
      %s141 = smul.addr %s140, 40
      %s142 = smul.addr %s141, 8
      %s143 = scalar_lea.vmem %s2, %s142
      %v145 = vld [vmem:[%s138] sm:$0xf]
      %v146 = vld [vmem:[%s138 + $0x4] sm:$0xf]
      %v147 = vld [vmem:[%s138 + $0x8] sm:$0xf]
      %v148 = vld [vmem:[%s138 + $0xc] sm:$0xf]
      %v149 = vld [vmem:[%s138 + $0x10] sm:$0xf]
      %v150 = vld [vmem:[%s138 + $0x14] sm:$0xf]
      %v151 = vld [vmem:[%s138 + $0x18] sm:$0xf]
      %v152 = vld [vmem:[%s138 + $0x1c] sm:$0xf]
      %v153 = vld [vmem:[%s138 + $0x20] sm:$0xf]
      %v154 = vld [vmem:[%s138 + $0x24] sm:$0xf]
      %v155 = vld [vmem:[%s138 + $0x28] sm:$0xf]
      %v156 = vld [vmem:[%s138 + $0x2c] sm:$0xf]
      %v157 = vld [vmem:[%s138 + $0x30] sm:$0xf]
      %v158 = vld [vmem:[%s138 + $0x34] sm:$0xf]
      %v159 = vld [vmem:[%s138 + $0x38] sm:$0xf]
      %v160 = vld [vmem:[%s138 + $0x3c] sm:$0xf]
      %v161 = vld [vmem:[%s138 + $0x40] sm:$0xf]
      %v162 = vld [vmem:[%s138 + $0x44] sm:$0xf]
      %v163 = vld [vmem:[%s138 + $0x48] sm:$0xf]
      %v164 = vld [vmem:[%s138 + $0x4c] sm:$0xf]
      %v165 = vld [vmem:[%s138 + $0x50] sm:$0xf]
      %v166 = vld [vmem:[%s138 + $0x54] sm:$0xf]
      %v167 = vld [vmem:[%s138 + $0x58] sm:$0xf]
      %v168 = vld [vmem:[%s138 + $0x5c] sm:$0xf]
      %v169 = vld [vmem:[%s138 + $0x60] sm:$0xf]
      %v170 = vld [vmem:[%s138 + $0x64] sm:$0xf]
      %v171 = vld [vmem:[%s138 + $0x68] sm:$0xf]
      %v172 = vld [vmem:[%s138 + $0x6c] sm:$0xf]
      %v173 = vld [vmem:[%s138 + $0x70] sm:$0xf]
      %v174 = vld [vmem:[%s138 + $0x74] sm:$0xf]
      %v175 = vld [vmem:[%s138 + $0x78] sm:$0xf]
      %v176 = vld [vmem:[%s138 + $0x7c] sm:$0xf]
      %v177 = vld [vmem:[%s138 + $0x80] sm:$0xf]
      %v178 = vld [vmem:[%s138 + $0x84] sm:$0xf]
      %v179 = vld [vmem:[%s138 + $0x88] sm:$0xf]
      %v180 = vld [vmem:[%s138 + $0x8c] sm:$0xf]
      %v181 = vld [vmem:[%s138 + $0x90] sm:$0xf]
      %v182 = vld [vmem:[%s138 + $0x94] sm:$0xf]
      %v183 = vld [vmem:[%s138 + $0x98] sm:$0xf]
      %v184 = vld [vmem:[%s138 + $0x9c] sm:$0xf]
      %v185 = vld [vmem:[%s1] sm:$0xf]
      %v186 = vld [vmem:[%s1 + $0x4] sm:$0xf]
      %v187 = vld [vmem:[%s1 + $0x8] sm:$0xf]
      %v188 = vld [vmem:[%s1 + $0xc] sm:$0xf]
      %v189 = vld [vmem:[%s1 + $0x10] sm:$0xf]
      %v190 = vld [vmem:[%s1 + $0x14] sm:$0xf]
      %v191 = vld [vmem:[%s1 + $0x18] sm:$0xf]
      %v192 = vld [vmem:[%s1 + $0x1c] sm:$0xf]
      %v193 = vld [vmem:[%s1 + $0x20] sm:$0xf]
      %v194 = vld [vmem:[%s1 + $0x24] sm:$0xf]
      %v195 = vld [vmem:[%s1 + $0x28] sm:$0xf]
      %v196 = vld [vmem:[%s1 + $0x2c] sm:$0xf]
      %v197 = vld [vmem:[%s1 + $0x30] sm:$0xf]
      %v198 = vld [vmem:[%s1 + $0x34] sm:$0xf]
      %v199 = vld [vmem:[%s1 + $0x38] sm:$0xf]
      %v200 = vld [vmem:[%s1 + $0x3c] sm:$0xf]
      %v241 = vunpack.c.l.b16 %v145
      %v242 = vunpack.c.l.b16 %v146
      %v243 = vunpack.c.l.b16 %v147
      %v244 = vunpack.c.l.b16 %v148
      %v245 = vunpack.c.l.b16 %v149
      %v246 = vunpack.c.l.b16 %v150
      %v247 = vunpack.c.l.b16 %v151
      %v248 = vunpack.c.l.b16 %v152
      %v249 = vunpack.c.l.b16 %v153
      %v250 = vunpack.c.l.b16 %v154
      %v251 = vunpack.c.l.b16 %v155
      %v252 = vunpack.c.l.b16 %v156
      %v253 = vunpack.c.l.b16 %v157
      %v254 = vunpack.c.l.b16 %v158
      %v255 = vunpack.c.l.b16 %v159
      %v256 = vunpack.c.l.b16 %v160
      %v257 = vunpack.c.l.b16 %v161
      %v258 = vunpack.c.l.b16 %v162
      %v259 = vunpack.c.l.b16 %v163
      %v260 = vunpack.c.l.b16 %v164
      %v261 = vunpack.c.l.b16 %v165
      %v262 = vunpack.c.l.b16 %v166
      %v263 = vunpack.c.l.b16 %v167
      %v264 = vunpack.c.l.b16 %v168
      %v265 = vunpack.c.l.b16 %v169
      %v266 = vunpack.c.l.b16 %v170
      %v267 = vunpack.c.l.b16 %v171
      %v268 = vunpack.c.l.b16 %v172
      %v269 = vunpack.c.l.b16 %v173
      %v270 = vunpack.c.l.b16 %v174
      %v271 = vunpack.c.l.b16 %v175
      %v272 = vunpack.c.l.b16 %v176
      %v273 = vunpack.c.l.b16 %v177
      %v274 = vunpack.c.l.b16 %v178
      %v275 = vunpack.c.l.b16 %v179
      %v276 = vunpack.c.l.b16 %v180
      %v277 = vunpack.c.l.b16 %v181
      %v278 = vunpack.c.l.b16 %v182
      %v279 = vunpack.c.l.b16 %v183
      %v280 = vunpack.c.l.b16 %v184
      %v281 = vpack.c.b16 %v242, %v241
      %v282 = vpack.c.b16 %v244, %v243
      %v283 = vpack.c.b16 %v246, %v245
      %v284 = vpack.c.b16 %v248, %v247
      %v285 = vpack.c.b16 %v250, %v249
      %v286 = vpack.c.b16 %v252, %v251
      %v287 = vpack.c.b16 %v254, %v253
      %v288 = vpack.c.b16 %v256, %v255
      %v289 = vpack.c.b16 %v258, %v257
      %v290 = vpack.c.b16 %v260, %v259
      %v291 = vpack.c.b16 %v262, %v261
      %v292 = vpack.c.b16 %v264, %v263
      %v293 = vpack.c.b16 %v266, %v265
      %v294 = vpack.c.b16 %v268, %v267
      %v295 = vpack.c.b16 %v270, %v269
      %v296 = vpack.c.b16 %v272, %v271
      %v297 = vpack.c.b16 %v274, %v273
      %v298 = vpack.c.b16 %v276, %v275
      %v299 = vpack.c.b16 %v278, %v277
      %v300 = vpack.c.b16 %v280, %v279
      %v337 = vunpack.c.l.b16 %v185
      %v338 = vunpack.c.l.b16 %v186
      %v339 = vunpack.c.l.b16 %v187
      %v340 = vunpack.c.l.b16 %v188
      %v341 = vunpack.c.l.b16 %v189
      %v342 = vunpack.c.l.b16 %v190
      %v343 = vunpack.c.l.b16 %v191
      %v344 = vunpack.c.l.b16 %v192
      %v345 = vunpack.c.l.b16 %v193
      %v346 = vunpack.c.l.b16 %v194
      %v347 = vunpack.c.l.b16 %v195
      %v348 = vunpack.c.l.b16 %v196
      %v349 = vunpack.c.l.b16 %v197
      %v350 = vunpack.c.l.b16 %v198
      %v351 = vunpack.c.l.b16 %v199
      %v352 = vunpack.c.l.b16 %v200
      %v353 = vpack.c.b16 %v338, %v337
      %v354 = vpack.c.b16 %v340, %v339
      %v355 = vpack.c.b16 %v342, %v341
      %v356 = vpack.c.b16 %v344, %v343
      %v357 = vpack.c.b16 %v346, %v345
      %v358 = vpack.c.b16 %v348, %v347
      %v359 = vpack.c.b16 %v350, %v349
      %v360 = vpack.c.b16 %v352, %v351
      %369 = vmatprep.subr.bf16.mxu0 0
      %370 = vmatpush1.bf16.msra.mxu0 %v360
      %371 = vmatprep.subr.bf16.mxu0 0
      %372 = vmatpush1.bf16.msra.mxu0 %v359
      %373 = vmatprep.subr.bf16.mxu0 0
      %374 = vmatpush1.bf16.msra.mxu0 %v358
      %375 = vmatprep.subr.bf16.mxu0 0
      %376 = vmatpush1.bf16.msra.mxu0 %v357
      %377 = vmatprep.subr.bf16.mxu0 0
      %378 = vmatpush1.bf16.msra.mxu0 %v356
      %379 = vmatprep.subr.bf16.mxu0 0
      %380 = vmatpush1.bf16.msra.mxu0 %v355
      %381 = vmatprep.subr.bf16.mxu0 0
      %382 = vmatpush1.bf16.msra.mxu0 %v354
      %383 = vmatprep.subr.bf16.mxu0 0
      %384 = vmatpush1.bf16.msra.mxu0 %v353
      %385 = vmatprep.subr.bf16.mxu0 0
      %386 = vmatpush2.bf16.msra.mxu0 0
      %387 = vmatprep.subr.bf16.mxu0 0
      %388 = vmatpush2.bf16.msra.mxu0 0
      %389 = vmatprep.subr.bf16.mxu0 0
      %390 = vmatpush2.bf16.msra.mxu0 0
      %391 = vmatprep.subr.bf16.mxu0 0
      %392 = vmatpush2.bf16.msra.mxu0 0
      %393 = vmatprep.subr.bf16.mxu0 0
      %394 = vmatpush2.bf16.msra.mxu0 0
      %395 = vmatprep.subr.bf16.mxu0 0
      %396 = vmatpush2.bf16.msra.mxu0 0
      %397 = vmatprep.subr.bf16.mxu0 0
      %398 = vmatpush2.bf16.msra.mxu0 0
      %399 = vmatprep.subr.bf16.mxu0 0
      %400 = vmatpush2.bf16.msra.mxu0 0
      %401 = vmatprep.mubr.bf16.mxu0 0
      %402 = vmatmul.mubr.bf16.gmra.mxu0 %v281
      %v403 = vpop.f32.mrf.mxu0
      %v404 = vadd.f32 0.0, %v403
      %v405 = vpop.f32.mrf.mxu0
      %v406 = vpop.f32.mrf.mxu0
      %v407 = vadd.f32 0.0, %v406
      %v408 = vpop.f32.mrf.mxu0
      %409 = vmatprep.mubr.bf16.mxu0 0
      %410 = vmatmul.mubr.bf16.gmra.mxu0 %v282
      %v411 = vpop.f32.mrf.mxu0
      %v412 = vadd.f32 0.0, %v411
      %v413 = vpop.f32.mrf.mxu0
      %v414 = vpop.f32.mrf.mxu0
      %v415 = vadd.f32 0.0, %v414
      %v416 = vpop.f32.mrf.mxu0
      %417 = vmatprep.mubr.bf16.mxu0 0
      %418 = vmatmul.mubr.bf16.gmra.mxu0 %v283
      %v419 = vpop.f32.mrf.mxu0
      %v420 = vadd.f32 0.0, %v419
      %v421 = vpop.f32.mrf.mxu0
      %v422 = vpop.f32.mrf.mxu0
      %v423 = vadd.f32 0.0, %v422
      %v424 = vpop.f32.mrf.mxu0
      %425 = vmatprep.mubr.bf16.mxu0 0
      %426 = vmatmul.mubr.bf16.gmra.mxu0 %v284
      %v427 = vpop.f32.mrf.mxu0
      %v428 = vadd.f32 0.0, %v427
      %v429 = vpop.f32.mrf.mxu0
      %v430 = vpop.f32.mrf.mxu0
      %v431 = vadd.f32 0.0, %v430
      %v432 = vpop.f32.mrf.mxu0
      %433 = vmatprep.mubr.bf16.mxu0 0
      %434 = vmatmul.mubr.bf16.gmra.mxu0 %v285
      %v435 = vpop.f32.mrf.mxu0
      %v436 = vadd.f32 0.0, %v435
      %v437 = vpop.f32.mrf.mxu0
      %v438 = vpop.f32.mrf.mxu0
      %v439 = vadd.f32 0.0, %v438
      %v440 = vpop.f32.mrf.mxu0
      %441 = vmatprep.mubr.bf16.mxu0 0
      %442 = vmatmul.mubr.bf16.gmra.mxu0 %v286
      %v443 = vpop.f32.mrf.mxu0
      %v444 = vadd.f32 0.0, %v443
      %v445 = vpop.f32.mrf.mxu0
      %v446 = vpop.f32.mrf.mxu0
      %v447 = vadd.f32 0.0, %v446
      %v448 = vpop.f32.mrf.mxu0
      %449 = vmatprep.mubr.bf16.mxu0 0
      %450 = vmatmul.mubr.bf16.gmra.mxu0 %v287
      %v451 = vpop.f32.mrf.mxu0
      %v452 = vadd.f32 0.0, %v451
      %v453 = vpop.f32.mrf.mxu0
      %v454 = vpop.f32.mrf.mxu0
      %v455 = vadd.f32 0.0, %v454
      %v456 = vpop.f32.mrf.mxu0
      %457 = vmatprep.mubr.bf16.mxu0 0
      %458 = vmatmul.mubr.bf16.gmra.mxu0 %v288
      %v459 = vpop.f32.mrf.mxu0
      %v460 = vadd.f32 0.0, %v459
      %v461 = vpop.f32.mrf.mxu0
      %v462 = vpop.f32.mrf.mxu0
      %v463 = vadd.f32 0.0, %v462
      %v464 = vpop.f32.mrf.mxu0
      %465 = vmatprep.mubr.bf16.mxu0 0
      %466 = vmatmul.mubr.bf16.gmra.mxu0 %v289
      %v467 = vpop.f32.mrf.mxu0
      %v468 = vadd.f32 0.0, %v467
      %v469 = vpop.f32.mrf.mxu0
      %v470 = vpop.f32.mrf.mxu0
      %v471 = vadd.f32 0.0, %v470
      %v472 = vpop.f32.mrf.mxu0
      %473 = vmatprep.mubr.bf16.mxu0 0
      %474 = vmatmul.mubr.bf16.gmra.mxu0 %v290
      %v475 = vpop.f32.mrf.mxu0
      %v476 = vadd.f32 0.0, %v475
      %v477 = vpop.f32.mrf.mxu0
      %v478 = vpop.f32.mrf.mxu0
      %v479 = vadd.f32 0.0, %v478
      %v480 = vpop.f32.mrf.mxu0
      %481 = vmatprep.mubr.bf16.mxu0 0
      %482 = vmatmul.mubr.bf16.gmra.mxu0 %v291
      %v483 = vpop.f32.mrf.mxu0
      %v484 = vadd.f32 0.0, %v483
      %v485 = vpop.f32.mrf.mxu0
      %v486 = vpop.f32.mrf.mxu0
      %v487 = vadd.f32 0.0, %v486
      %v488 = vpop.f32.mrf.mxu0
      %489 = vmatprep.mubr.bf16.mxu0 0
      %490 = vmatmul.mubr.bf16.gmra.mxu0 %v292
      %v491 = vpop.f32.mrf.mxu0
      %v492 = vadd.f32 0.0, %v491
      %v493 = vpop.f32.mrf.mxu0
      %v494 = vpop.f32.mrf.mxu0
      %v495 = vadd.f32 0.0, %v494
      %v496 = vpop.f32.mrf.mxu0
      %497 = vmatprep.mubr.bf16.mxu0 0
      %498 = vmatmul.mubr.bf16.gmra.mxu0 %v293
      %v499 = vpop.f32.mrf.mxu0
      %v500 = vadd.f32 0.0, %v499
      %v501 = vpop.f32.mrf.mxu0
      %v502 = vpop.f32.mrf.mxu0
      %v503 = vadd.f32 0.0, %v502
      %v504 = vpop.f32.mrf.mxu0
      %505 = vmatprep.mubr.bf16.mxu0 0
      %506 = vmatmul.mubr.bf16.gmra.mxu0 %v294
      %v507 = vpop.f32.mrf.mxu0
      %v508 = vadd.f32 0.0, %v507
      %v509 = vpop.f32.mrf.mxu0
      %v510 = vpop.f32.mrf.mxu0
      %v511 = vadd.f32 0.0, %v510
      %v512 = vpop.f32.mrf.mxu0
      %513 = vmatprep.mubr.bf16.mxu0 0
      %514 = vmatmul.mubr.bf16.gmra.mxu0 %v295
      %v515 = vpop.f32.mrf.mxu0
      %v516 = vadd.f32 0.0, %v515
      %v517 = vpop.f32.mrf.mxu0
      %v518 = vpop.f32.mrf.mxu0
      %v519 = vadd.f32 0.0, %v518
      %v520 = vpop.f32.mrf.mxu0
      %521 = vmatprep.mubr.bf16.mxu0 0
      %522 = vmatmul.mubr.bf16.gmra.mxu0 %v296
      %v523 = vpop.f32.mrf.mxu0
      %v524 = vadd.f32 0.0, %v523
      %v525 = vpop.f32.mrf.mxu0
      %v526 = vpop.f32.mrf.mxu0
      %v527 = vadd.f32 0.0, %v526
      %v528 = vpop.f32.mrf.mxu0
      %529 = vmatprep.mubr.bf16.mxu0 0
      %530 = vmatmul.mubr.bf16.gmra.mxu0 %v297
      %v531 = vpop.f32.mrf.mxu0
      %v532 = vadd.f32 0.0, %v531
      %v533 = vpop.f32.mrf.mxu0
      %v534 = vpop.f32.mrf.mxu0
      %v535 = vadd.f32 0.0, %v534
      %v536 = vpop.f32.mrf.mxu0
      %537 = vmatprep.mubr.bf16.mxu0 0
      %538 = vmatmul.mubr.bf16.gmra.mxu0 %v298
      %v539 = vpop.f32.mrf.mxu0
      %v540 = vadd.f32 0.0, %v539
      %v541 = vpop.f32.mrf.mxu0
      %v542 = vpop.f32.mrf.mxu0
      %v543 = vadd.f32 0.0, %v542
      %v544 = vpop.f32.mrf.mxu0
      %545 = vmatprep.mubr.bf16.mxu0 0
      %546 = vmatmul.mubr.bf16.gmra.mxu0 %v299
      %v547 = vpop.f32.mrf.mxu0
      %v548 = vadd.f32 0.0, %v547
      %v549 = vpop.f32.mrf.mxu0
      %v550 = vpop.f32.mrf.mxu0
      %v551 = vadd.f32 0.0, %v550
      %v552 = vpop.f32.mrf.mxu0
      %553 = vmatprep.mubr.bf16.mxu0 0
      %554 = vmatmul.mubr.bf16.gmra.mxu0 %v300
      %v555 = vpop.f32.mrf.mxu0
      %v556 = vadd.f32 0.0, %v555
      %v557 = vpop.f32.mrf.mxu0
      %v558 = vpop.f32.mrf.mxu0
      %v559 = vadd.f32 0.0, %v558
      %v560 = vpop.f32.mrf.mxu0
      %561 = vdwg.mxu0
      %562 = vst [vmem:[%s143] sm:$0xff] %v404
      %563 = vst [vmem:[%s143 + $0x8] sm:$0xff] %v407
      %564 = vst [vmem:[%s143 + $0x10] sm:$0xff] %v412
      %565 = vst [vmem:[%s143 + $0x18] sm:$0xff] %v415
      %566 = vst [vmem:[%s143 + $0x20] sm:$0xff] %v420
      %567 = vst [vmem:[%s143 + $0x28] sm:$0xff] %v423
      %568 = vst [vmem:[%s143 + $0x30] sm:$0xff] %v428
      %569 = vst [vmem:[%s143 + $0x38] sm:$0xff] %v431
      %570 = vst [vmem:[%s143 + $0x40] sm:$0xff] %v436
      %571 = vst [vmem:[%s143 + $0x48] sm:$0xff] %v439
      %572 = vst [vmem:[%s143 + $0x50] sm:$0xff] %v444
      %573 = vst [vmem:[%s143 + $0x58] sm:$0xff] %v447
      %574 = vst [vmem:[%s143 + $0x60] sm:$0xff] %v452
      %575 = vst [vmem:[%s143 + $0x68] sm:$0xff] %v455
      %576 = vst [vmem:[%s143 + $0x70] sm:$0xff] %v460
      %577 = vst [vmem:[%s143 + $0x78] sm:$0xff] %v463
      %578 = vst [vmem:[%s143 + $0x80] sm:$0xff] %v468
      %579 = vst [vmem:[%s143 + $0x88] sm:$0xff] %v471
      %580 = vst [vmem:[%s143 + $0x90] sm:$0xff] %v476
      %581 = vst [vmem:[%s143 + $0x98] sm:$0xff] %v479
      %582 = vst [vmem:[%s143 + $0xa0] sm:$0xff] %v484
      %583 = vst [vmem:[%s143 + $0xa8] sm:$0xff] %v487
      %584 = vst [vmem:[%s143 + $0xb0] sm:$0xff] %v492
      %585 = vst [vmem:[%s143 + $0xb8] sm:$0xff] %v495
      %586 = vst [vmem:[%s143 + $0xc0] sm:$0xff] %v500
      %587 = vst [vmem:[%s143 + $0xc8] sm:$0xff] %v503
      %588 = vst [vmem:[%s143 + $0xd0] sm:$0xff] %v508
      %589 = vst [vmem:[%s143 + $0xd8] sm:$0xff] %v511
      %590 = vst [vmem:[%s143 + $0xe0] sm:$0xff] %v516
      %591 = vst [vmem:[%s143 + $0xe8] sm:$0xff] %v519
      %592 = vst [vmem:[%s143 + $0xf0] sm:$0xff] %v524
      %593 = vst [vmem:[%s143 + $0xf8] sm:$0xff] %v527
      %594 = vst [vmem:[%s143 + $0x100] sm:$0xff] %v532
      %595 = vst [vmem:[%s143 + $0x108] sm:$0xff] %v535
      %596 = vst [vmem:[%s143 + $0x110] sm:$0xff] %v540
      %597 = vst [vmem:[%s143 + $0x118] sm:$0xff] %v543
      %598 = vst [vmem:[%s143 + $0x120] sm:$0xff] %v548
      %599 = vst [vmem:[%s143 + $0x128] sm:$0xff] %v551
      %600 = vst [vmem:[%s143 + $0x130] sm:$0xff] %v556
      %601 = vst [vmem:[%s143 + $0x138] sm:$0xff] %v559
      %p602 = scmp.lt.s32.totalorder %s13, 1
      %s603 = scalar_select %p602, %s13, 1
      %s604 = smul.addr %s603, 40
      %s605 = smul.addr %s604, 8
      %s606 = scalar_lea.vmem %s2, %s605
      // Predicated region
      $region29: #{box_predictor_forward.1} parent=27 // pred_check
        %p607 = pneg %p78
      $region30: #{box_predictor_forward.1} parent=27 // pred_check_branch
        %609 = sbr.rel (%p607) target = $region32
      $region31: #{box_predictor_forward.1} parent=27 // pred_region
        _
      $region32: #{box_predictor_forward.1} parent=27 // pred_fallthru
        _
    $region28: #{box_predictor_forward.1} parent=5 // pred_fallthru
      _
    %p610 = scmp.le.s32.totalorder 2, %s8
    // Predicated region
    $region33: #{box_predictor_forward.1} parent=5 // pred_check
      %p611 = pneg %p610
    $region34: #{box_predictor_forward.1} parent=5 // pred_check_branch
      %613 = sbr.rel (%p611) target = $region36
    $region35: #{box_predictor_forward.1} parent=5 // pred_region
      %s614 = ssub.s32 %s8, 2
      // Predicated region
      $region37: #{box_predictor_forward.1} parent=35 // pred_check
        %p615 = pneg %p84
      $region38: #{box_predictor_forward.1} parent=35 // pred_check_branch
        %617 = sbr.rel (%p615) target = $region40
      $region39: #{box_predictor_forward.1} parent=35 // pred_region
        %p618 = scmp.lt.s32.totalorder %s14, 1
        %s619 = scalar_select %p618, %s14, 1
        %s620 = smul.addr %s619, 40
        %s621 = smul.addr %s620, 8
        %s622 = scalar_lea.vmem %s2, %s621
      $region40: #{box_predictor_forward.1} parent=35 // pred_fallthru
        _
    $region36: #{box_predictor_forward.1} parent=5 // pred_fallthru
      _
  $region6: #{box_predictor_forward.1} parent=0 // loop_footer
    %s12 = sadd.s32 1, %s8
  $region7: #{box_predictor_forward.1} parent=0 // loop_footer_branch
    %7 = sbr.rel target = $region3
  $region8: #{box_predictor_forward.1} parent=0 // loop_exit
    _

</llo_original>
